<compile_context>
chip_gen: v7x
topology: tpu7x:2x2x1
jax: 0.10.0
libtpu: 0.0.40
codegen_flags: <defaults>
</compile_context>

<pallas_src>
import functools

import jax
import jax.numpy as jnp
from jax.experimental import pallas as pl
from jax.experimental.pallas import tpu as pltpu

_LANE = 128
_ACC_SUB = 8                              # accumulator = one f32 vreg: (8, 128)
_TARGET_BLOCK_BYTES = 2 * 1024 * 1024     # HBM bytes per input per grid step


def _round_up(x, m):
    return ((x + m - 1) // m) * m


# ------------------------------ fused loss kernel ---------------------------------
def _fused_loss_kernel(*refs, block_rows, valid_rows, nblocks, steps_per_split,
                       with_domain, has_partial, needs_bound_check):
    if with_domain:
        a_ref, b_ref, labels_ref, logits_ref, out_ref, acc_ref = refs
    else:
        a_ref, b_ref, out_ref, acc_ref = refs
        labels_ref = logits_ref = None

    c = pl.program_id(0)                  # split (parallel -> megacore on v7x)
    i = pl.program_id(1)                  # row-block step within the split
    lb = c * steps_per_split + i          # logical row-block index

    @pl.when(i == 0)
    def _init():
        acc_ref[...] = jnp.zeros_like(acc_ref)

    def _accumulate(mask_rows):
        a = a_ref[...].astype(jnp.float32)
        b = b_ref[...].astype(jnp.float32)
        d = a - b
        if mask_rows:
            row = jax.lax.broadcasted_iota(jnp.int32, (block_rows, _LANE), 0)
            row = row + lb * block_rows
            d = jnp.where(row < valid_rows, d, 0.0)
        sq = d * d
        # Layout-friendly partial reduce into a single vreg-shaped accumulator.
        acc_ref[...] += jnp.sum(
            sq.reshape(block_rows // _ACC_SUB, _ACC_SUB, _LANE), axis=0)

    # Steady state: pure stream-subtract-square-accumulate (no mask).
    n_full = nblocks - 1 if has_partial else nblocks
    if has_partial or needs_bound_check:
        @pl.when(lb < n_full)
        def _steady():
            _accumulate(mask_rows=False)
    else:
        _accumulate(mask_rows=False)

    # Partial last block: mask path compiled only when the array doesn't tile evenly.
    if has_partial:
        @pl.when(lb == nblocks - 1)
        def _tail_block():
            _accumulate(mask_rows=True)

    # Per-split finalize: write [partial_mse_sum, ce, 0, ...] as one lane-dense row.
    @pl.when(i == steps_per_split - 1)
    def _finalize():
        partial = jnp.sum(acc_ref[...])
        if with_domain:
            logits = logits_ref[...].astype(jnp.float32)          # (B, C)
            labels = labels_ref[...]                               # (B, 1) int32
            m = jnp.max(logits, axis=-1, keepdims=True)
            lse = jnp.log(jnp.sum(jnp.exp(logits - m), axis=-1,
                                  keepdims=True)) + m
            col = jax.lax.broadcasted_iota(jnp.int32, logits.shape, 1)
            onehot = (col == labels).astype(jnp.float32)
            picked = jnp.sum(logits * onehot, axis=-1, keepdims=True)
            ce = jnp.mean(lse - picked)
        else:
            ce = jnp.float32(0.0)
        lane = jax.lax.broadcasted_iota(jnp.int32, (1, _LANE), 1)
        out_ref[...] = (partial * (lane == 0).astype(jnp.float32)
                        + ce * (lane == 1).astype(jnp.float32))


# --------------------------------- wrapper -----------------------------------------
def streamlined_loss_pallas(target_pred, targets, domain_logits=None,
                            domain_labels=None, alpha_domain=0.1):
    """Returns (total_loss, main_loss, domain_loss)."""
    assert target_pred.shape == targets.shape
    n = int(target_pred.size)
    with_domain = (alpha_domain > 0 and domain_labels is not None
                   and domain_logits is not None)

    a_flat = target_pred.reshape(-1)
    b_flat = targets.reshape(-1)
    if not jnp.issubdtype(a_flat.dtype, jnp.floating):
        a_flat = a_flat.astype(jnp.float32)
        b_flat = b_flat.astype(jnp.float32)

    # Lane-aligned prefix streamed through the kernel; the <128-element tail (if any)
    # is reduced with a tiny jnp op instead of jnp.pad-ing full HBM copies.
    n_main = (n // _LANE) * _LANE
    rows = n_main // _LANE
    if n_main < n:
        ta = a_flat[n_main:].astype(jnp.float32)
        tb = b_flat[n_main:].astype(jnp.float32)
        tail_sq = jnp.sum((ta - tb) ** 2)
    else:
        tail_sq = jnp.float32(0.0)

    def _ce_jnp():
        logp = jax.nn.log_softmax(domain_logits.astype(jnp.float32), axis=-1)
        lab = domain_labels.reshape(-1, 1).astype(jnp.int32)
        return -jnp.mean(jnp.take_along_axis(logp, lab, axis=-1))

    if rows == 0:                         # everything is in the tail
        main_loss = tail_sq / jnp.float32(n)
        domain_loss = _ce_jnp() if with_domain else jnp.float32(0.0)
        total = main_loss + jnp.float32(alpha_domain) * domain_loss
        return total, main_loss, domain_loss

    a2 = (a_flat[:n_main] if n_main < n else a_flat).reshape(rows, _LANE)
    b2 = (b_flat[:n_main] if n_main < n else b_flat).reshape(rows, _LANE)

    itemsize = a2.dtype.itemsize
    sub = max(_ACC_SUB, 32 // itemsize)                 # 8 f32, 16 bf16, 32 int8
    max_block_rows = max(sub, _TARGET_BLOCK_BYTES // (_LANE * itemsize))
    block_rows = min(max_block_rows, _round_up(rows, sub))
    nblocks = pl.cdiv(rows, block_rows)

    num_splits = 2 if nblocks >= 2 else 1               # both TCs on v7x megacore
    steps_per_split = pl.cdiv(nblocks, num_splits)
    has_partial = (rows % block_rows != 0)
    needs_bound_check = (num_splits * steps_per_split != nblocks)

    if needs_bound_check:
        def _row_block(c, i, _spc=steps_per_split, _nb=nblocks):
            return (jnp.minimum(c * _spc + i, _nb - 1), 0)
    else:
        def _row_block(c, i, _spc=steps_per_split):
            return (c * _spc + i, 0)

    in_arrays = [a2, b2]
    in_specs = [pl.BlockSpec((block_rows, _LANE), _row_block),
                pl.BlockSpec((block_rows, _LANE), _row_block)]
    flops = 3 * rows * _LANE
    bytes_accessed = 2 * rows * _LANE * itemsize + num_splits * _LANE * 4
    transcendentals = 0
    if with_domain:
        B, C = domain_logits.shape
        labels2d = domain_labels.reshape(B, 1).astype(jnp.int32)
        in_arrays += [labels2d, domain_logits]
        in_specs += [pl.BlockSpec((B, 1), lambda c, i: (0, 0)),
                     pl.BlockSpec((B, C), lambda c, i: (0, 0))]
        bytes_accessed += labels2d.size * 4 + domain_logits.size * domain_logits.dtype.itemsize
        transcendentals += num_splits * (B * C + B)
        flops += num_splits * 6 * B * C

    kernel = functools.partial(
        _fused_loss_kernel,
        block_rows=block_rows,
        valid_rows=rows,
        nblocks=nblocks,
        steps_per_split=steps_per_split,
        with_domain=with_domain,
        has_partial=has_partial,
        needs_bound_check=needs_bound_check,
    )

    out = pl.pallas_call(
        kernel,
        out_shape=jax.ShapeDtypeStruct((num_splits, _LANE), jnp.float32),
        grid=(num_splits, steps_per_split),
        in_specs=in_specs,
        out_specs=pl.BlockSpec((1, _LANE), lambda c, i: (c, 0)),
        scratch_shapes=[pltpu.VMEM((_ACC_SUB, _LANE), jnp.float32)],
        compiler_params=pltpu.CompilerParams(
            dimension_semantics=("parallel", "arbitrary"),
            vmem_limit_bytes=32 * 1024 * 1024,
        ),
        cost_estimate=pl.CostEstimate(
            flops=int(flops),
            transcendentals=int(transcendentals),
            bytes_accessed=int(bytes_accessed),
        ),
    )(*in_arrays)

    mse_sum = jnp.sum(out[:, 0]) + tail_sq
    main_loss = mse_sum / jnp.float32(n)
    domain_loss = out[0, 1] if with_domain else jnp.float32(0.0)
    total = main_loss + jnp.float32(alpha_domain) * domain_loss
    return total, main_loss, domain_loss


# --------------------------------- Module forward ----------------------------------
def streamlined_loss_forward(model_outputs, targets, images, masks,
                             domain_labels=None, alpha_domain=0.1):
    """JAX/Pallas equivalent of StreamlinedLoss.forward."""
    target_pred = model_outputs['target_pred']
    domain_logits = model_outputs.get('domain_logits', None)

    total_loss, main_loss, domain_loss = streamlined_loss_pallas(
        target_pred, targets,
        domain_logits=domain_logits,
        domain_labels=domain_labels,
        alpha_domain=alpha_domain,
    )
    loss_dict = {'main_loss': main_loss, 'domain_loss': domain_loss}
    return total_loss, loss_dict


if __name__ == "__main__":
    key = jax.random.PRNGKey(0)
    ks = jax.random.split(key, 10)

    def ref_loss(tp, tg, dl, lab, alpha):
        main = jnp.mean((tp.astype(jnp.float32) - tg.astype(jnp.float32)) ** 2)
        if dl is not None and lab is not None and alpha > 0:
            logp = jax.nn.log_softmax(dl.astype(jnp.float32), axis=-1)
            ce = -jnp.mean(jnp.take_along_axis(logp, lab.reshape(-1, 1), axis=-1))
        else:
            ce = jnp.float32(0.0)
        return main + alpha * ce, main, ce

    # ---- Test A: module-style forward at the spec's small shapes -------------------
    B, C, H, W = 2, 4, 16, 16
    NUM_DOMAINS = 4
    pred = jax.random.normal(ks[0], (B, C, H, W), jnp.float32)
    target_pred = jax.random.normal(ks[1], (B, C, H, W), jnp.float32)
    fixation = jax.random.normal(ks[2], (B, 1, H, W), jnp.float32)
    domain_logits = jax.random.normal(ks[3], (B, NUM_DOMAINS), jnp.float32)
    targets = jax.random.normal(ks[4], (B, C, H, W), jnp.float32)
    images = jax.random.normal(ks[5], (B, 3, H, W), jnp.float32)
    masks = jnp.zeros((B, 1, H, W), jnp.float32)
    domain_labels = jnp.array([0, 2], jnp.int32)

    model_outputs = {'pred': pred, 'target_pred': target_pred, 'fixation': fixation,
                     'pvt_features': None, 'domain_logits': domain_logits}
    total_loss, loss_dict = streamlined_loss_forward(
        model_outputs, targets, images, masks,
        domain_labels=domain_labels, alpha_domain=0.1)
    total_loss = jax.block_until_ready(total_loss)

    rt, rm, rc = ref_loss(target_pred, targets, domain_logits, domain_labels, 0.1)
    assert jnp.allclose(loss_dict['main_loss'], rm, rtol=1e-5, atol=1e-6), (loss_dict['main_loss'], rm)
    assert jnp.allclose(loss_dict['domain_loss'], rc, rtol=1e-5, atol=1e-6), (loss_dict['domain_loss'], rc)
    assert jnp.allclose(total_loss, rt, rtol=1e-5, atol=1e-6), (total_loss, rt)

    # ---- Test B: multi-block, 2-way split, partial last block, clamped index -------
    big = (2, 9, 512, 128)        # 1,179,648 elems -> 3 row-blocks, 2 splits
    ab = jax.random.normal(ks[6], big, jnp.float32)
    bb = ab + 0.1 * jax.random.normal(ks[7], big, jnp.float32)
    tb_tot, tb_main, tb_dom = streamlined_loss_pallas(
        ab, bb, domain_logits, domain_labels, alpha_domain=0.1)
    jax.block_until_ready(tb_tot)
    rt, rm, rc = ref_loss(ab, bb, domain_logits, domain_labels, 0.1)
    assert jnp.allclose(tb_main, rm, rtol=1e-3, atol=1e-6), (tb_main, rm)
    assert jnp.allclose(tb_dom, rc, rtol=1e-5, atol=1e-6), (tb_dom, rc)
    assert jnp.allclose(tb_tot, rt, rtol=1e-3, atol=1e-6), (tb_tot, rt)

    # ---- Test C: lane-misaligned numel (tail path), no domain loss ------------------
    odd = (3, 5, 7, 11)           # 1155 elems -> 9 full lanes + 3-element tail
    ac = jax.random.normal(ks[8], odd, jnp.float32)
    bc = jax.random.normal(ks[9], odd, jnp.float32)
    tc_tot, tc_main, tc_dom = streamlined_loss_pallas(ac, bc, None, None, alpha_domain=0.1)
    jax.block_until_ready(tc_tot)
    rt, rm, rc = ref_loss(ac, bc, None, None, 0.1)
    assert jnp.allclose(tc_main, rm, rtol=1e-5, atol=1e-6), (tc_main, rm)
    assert jnp.allclose(tc_dom, 0.0), tc_dom
    assert jnp.allclose(tc_tot, rt, rtol=1e-5, atol=1e-6), (tc_tot, rt)

    print("KERNEL_OK")
</pallas_src>

<mosaic_0001>
module attributes {stable_mosaic.version = 11 : i64} {
  func.func @_fused_loss_kernel(%arg0: i32, %arg1: i32, %arg2: memref<16x128xf32, #tpu.memory_space<vmem>>, %arg3: memref<16x128xf32, #tpu.memory_space<vmem>>, %arg4: memref<2x1xi32, #tpu.memory_space<vmem>>, %arg5: memref<2x4xf32, #tpu.memory_space<vmem>>, %arg6: memref<1x128xf32, #tpu.memory_space<vmem>>, %arg7: memref<8x128xf32, #tpu.memory_space<vmem>>) attributes {dimension_semantics = [#tpu.dimension_semantics<parallel>, #tpu.dimension_semantics<arbitrary>], iteration_bounds = array<i64: 1, 1>, scalar_prefetch = 0 : i64, scratch_operands = 1 : i64, tpu.core_type = #tpu.core_type<tc>, window_params = [{transform_indices = @transform_0, window_bounds = array<i64: 16, 128>}, {transform_indices = @transform_1, window_bounds = array<i64: 16, 128>}, {pipeline_mode = #tpu.pipeline_mode<synchronous>, transform_indices = @transform_2, window_bounds = array<i64: 2, 1>}, {pipeline_mode = #tpu.pipeline_mode<synchronous>, transform_indices = @transform_3, window_bounds = array<i64: 2, 4>}, {transform_indices = @transform_4, window_bounds = array<i64: 1, 128>}]} {
    %c0_i32 = arith.constant 0 : i32
    %0 = arith.cmpi eq, %arg1, %c0_i32 : i32
    %1 = arith.extui %0 : i1 to i32
    %c0_i32_0 = arith.constant 0 : i32
    %2 = arith.cmpi ne, %1, %c0_i32_0 : i32
    scf.if %2 {
      %cst_10 = arith.constant 0.000000e+00 : f32
      %15 = vector.broadcast %cst_10 : f32 to vector<8x128xf32>
      %c0_11 = arith.constant 0 : index
      %c0_12 = arith.constant 0 : index
      %16 = vector.load %arg7[%c0_11, %c0_12] : memref<8x128xf32, #tpu.memory_space<vmem>>, vector<8x128xf32>
      tpu.vector_store %arg7[%c0_11, %c0_12], %15 {strides = array<i32>} : memref<8x128xf32, #tpu.memory_space<vmem>>, vector<8x128xf32>,
    } else {
    }
    %c0 = arith.constant 0 : index
    %c0_1 = arith.constant 0 : index
    %3 = vector.load %arg2[%c0, %c0_1] : memref<16x128xf32, #tpu.memory_space<vmem>>, vector<16x128xf32>
    %c0_2 = arith.constant 0 : index
    %c0_3 = arith.constant 0 : index
    %4 = vector.load %arg3[%c0_2, %c0_3] : memref<16x128xf32, #tpu.memory_space<vmem>>, vector<16x128xf32>
    %5 = arith.subf %3, %4 : vector<16x128xf32>
    %6 = arith.mulf %5, %5 : vector<16x128xf32>
    %c0_4 = arith.constant 0 : index
    %c0_5 = arith.constant 0 : index
    %7 = vector.load %arg7[%c0_4, %c0_5] : memref<8x128xf32, #tpu.memory_space<vmem>>, vector<8x128xf32>
    %8 = vector.shape_cast %6 : vector<16x128xf32> to vector<2x8x128xf32>
    %cst = arith.constant dense<0.000000e+00> : vector<8x128xf32>
    %9 = vector.multi_reduction <add>, %8, %cst [0] : vector<2x8x128xf32> to vector<8x128xf32>
    %10 = arith.addf %7, %9 : vector<8x128xf32>
    %c0_6 = arith.constant 0 : index
    %c0_7 = arith.constant 0 : index
    %11 = vector.load %arg7[%c0_6, %c0_7] : memref<8x128xf32, #tpu.memory_space<vmem>>, vector<8x128xf32>
    tpu.vector_store %arg7[%c0_6, %c0_7], %10 {strides = array<i32>} : memref<8x128xf32, #tpu.memory_space<vmem>>, vector<8x128xf32>,
    %c0_i32_8 = arith.constant 0 : i32
    %12 = arith.cmpi eq, %arg1, %c0_i32_8 : i32
    %13 = arith.extui %12 : i1 to i32
    %c0_i32_9 = arith.constant 0 : i32
    %14 = arith.cmpi ne, %13, %c0_i32_9 : i32
    scf.if %14 {
      %c0_10 = arith.constant 0 : index
      %c0_11 = arith.constant 0 : index
      %15 = vector.load %arg7[%c0_10, %c0_11] : memref<8x128xf32, #tpu.memory_space<vmem>>, vector<8x128xf32>
      %16 = vector.shape_cast %15 : vector<8x128xf32> to vector<1x8x128xf32>
      %cst_12 = arith.constant dense<0.000000e+00> : vector<1xf32>
      %17 = vector.multi_reduction <add>, %16, %cst_12 [1, 2] : vector<1x8x128xf32> to vector<1xf32>
      %18 = vector.shape_cast %17 : vector<1xf32> to vector<1x1x1xf32>
      %19 = vector.extract %18[0, 0, 0] : f32 from vector<1x1x1xf32>
      %c0_13 = arith.constant 0 : index
      %c0_14 = arith.constant 0 : index
      %20 = vector.load %arg5[%c0_13, %c0_14] : memref<2x4xf32, #tpu.memory_space<vmem>>, vector<2x4xf32>
      %c0_15 = arith.constant 0 : index
      %c0_16 = arith.constant 0 : index
      %21 = vector.load %arg4[%c0_15, %c0_16] : memref<2x1xi32, #tpu.memory_space<vmem>>, vector<2x1xi32>
      %cst_17 = arith.constant dense<0xFF800000> : vector<2xf32>
      %22 = vector.multi_reduction <maximumf>, %20, %cst_17 [1] : vector<2x4xf32> to vector<2xf32>
      %23 = vector.shape_cast %22 : vector<2xf32> to vector<2x1xf32>
      %24 = vector.broadcast %23 : vector<2x1xf32> to vector<2x4xf32>
      %25 = arith.subf %20, %24 : vector<2x4xf32>
      %26 = math.exp %25 : vector<2x4xf32>
      %cst_18 = arith.constant dense<0.000000e+00> : vector<2xf32>
      %27 = vector.multi_reduction <add>, %26, %cst_18 [1] : vector<2x4xf32> to vector<2xf32>
      %28 = vector.shape_cast %27 : vector<2xf32> to vector<2x1xf32>
      %29 = math.log %28 : vector<2x1xf32>
      %30 = arith.addf %29, %23 : vector<2x1xf32>
      %31 = tpu.iota {dimensions = array<i32: 1>} : vector<2x4xi32>
      %32 = vector.broadcast %21 : vector<2x1xi32> to vector<2x4xi32>
      %33 = arith.cmpi eq, %31, %32 : vector<2x4xi32>
      %34 = arith.extui %33 : vector<2x4xi1> to vector<2x4xi32>
      %35 = arith.sitofp %34 : vector<2x4xi32> to vector<2x4xf32>
      %36 = arith.mulf %20, %35 : vector<2x4xf32>
      %cst_19 = arith.constant dense<0.000000e+00> : vector<2xf32>
      %37 = vector.multi_reduction <add>, %36, %cst_19 [1] : vector<2x4xf32> to vector<2xf32>
      %38 = vector.shape_cast %37 : vector<2xf32> to vector<2x1xf32>
      %39 = arith.subf %30, %38 : vector<2x1xf32>
      %40 = vector.shape_cast %39 : vector<2x1xf32> to vector<1x2x1xf32>
      %cst_20 = arith.constant dense<0.000000e+00> : vector<1xf32>
      %41 = vector.multi_reduction <add>, %40, %cst_20 [1, 2] : vector<1x2x1xf32> to vector<1xf32>
      %42 = vector.shape_cast %41 : vector<1xf32> to vector<1x1x1xf32>
      %43 = vector.extract %42[0, 0, 0] : f32 from vector<1x1x1xf32>
      %cst_21 = arith.constant 2.000000e+00 : f32
      %44 = arith.divf %43, %cst_21 : f32
      %45 = tpu.iota {dimensions = array<i32: 1>} : vector<1x128xi32>
      %c0_i32_22 = arith.constant 0 : i32
      %46 = vector.broadcast %c0_i32_22 : i32 to vector<1x128xi32>
      %47 = arith.cmpi eq, %45, %46 : vector<1x128xi32>
      %48 = arith.extui %47 : vector<1x128xi1> to vector<1x128xi32>
      %49 = arith.sitofp %48 : vector<1x128xi32> to vector<1x128xf32>
      %50 = vector.broadcast %19 : f32 to vector<1x128xf32>
      %51 = arith.mulf %50, %49 : vector<1x128xf32>
      %c1_i32 = arith.constant 1 : i32
      %52 = vector.broadcast %c1_i32 : i32 to vector<1x128xi32>
      %53 = arith.cmpi eq, %45, %52 : vector<1x128xi32>
      %54 = arith.extui %53 : vector<1x128xi1> to vector<1x128xi32>
      %55 = arith.sitofp %54 : vector<1x128xi32> to vector<1x128xf32>
      %56 = vector.broadcast %44 : f32 to vector<1x128xf32>
      %57 = arith.mulf %56, %55 : vector<1x128xf32>
      %58 = arith.addf %51, %57 : vector<1x128xf32>
      %c0_23 = arith.constant 0 : index
      %c0_24 = arith.constant 0 : index
      %59 = vector.load %arg6[%c0_23, %c0_24] : memref<1x128xf32, #tpu.memory_space<vmem>>, vector<1x128xf32>
      tpu.vector_store %arg6[%c0_23, %c0_24], %58 {strides = array<i32>} : memref<1x128xf32, #tpu.memory_space<vmem>>, vector<1x128xf32>,
    } else {
    }
    return
  }
  func.func @transform_0(%arg0: i32, %arg1: i32) -> (i32, i32) {
    %c1_i32 = arith.constant 1 : i32
    %0 = arith.muli %arg0, %c1_i32 : i32
    %1 = arith.addi %0, %arg1 : i32
    %c0_i32 = arith.constant 0 : i32
    %c0_i32_0 = arith.constant 0 : i32
    return %1, %c0_i32 : i32, i32
  }
  func.func @transform_1(%arg0: i32, %arg1: i32) -> (i32, i32) {
    %c1_i32 = arith.constant 1 : i32
    %0 = arith.muli %arg0, %c1_i32 : i32
    %1 = arith.addi %0, %arg1 : i32
    %c0_i32 = arith.constant 0 : i32
    %c0_i32_0 = arith.constant 0 : i32
    return %1, %c0_i32 : i32, i32
  }
  func.func @transform_2(%arg0: i32, %arg1: i32) -> (i32, i32) {
    %c0_i32 = arith.constant 0 : i32
    %c0_i32_0 = arith.constant 0 : i32
    %c0_i32_1 = arith.constant 0 : i32
    return %c0_i32, %c0_i32_0 : i32, i32
  }
  func.func @transform_3(%arg0: i32, %arg1: i32) -> (i32, i32) {
    %c0_i32 = arith.constant 0 : i32
    %c0_i32_0 = arith.constant 0 : i32
    %c0_i32_1 = arith.constant 0 : i32
    return %c0_i32, %c0_i32_0 : i32, i32
  }
  func.func @transform_4(%arg0: i32, %arg1: i32) -> (i32, i32) {
    %c0_i32 = arith.constant 0 : i32
    %c0_i32_0 = arith.constant 0 : i32
    return %arg0, %c0_i32 : i32, i32
  }
}

</mosaic_0001>

<llo_original>
// kernel: tpu_custom_call.1
$region0: #{tpu_custom_call.1}
  #allocation0 [shape = 'u32[]', space=smem, size = 0x4, offset = 0x4, fixed_abs, tag = 'smem constant byte address 0x4 - core index']
  #allocation1 [shape = 'u32[144,128]{1,0:T(1,128)}', space=vmem, size = 0x12000, scoped, tag = 'internal scratch']
  #allocation2 [shape = 'f32[8,128]{1,0:T(8,128)}', space=vmem, size = 0x1000, scoped, tag = 'scratch operand']
  %s0 = inlined_call_operand.hbm [shape: f32[16,128], index: 0, kind: input, shape index: {}]
  %s1 = inlined_call_operand.hbm [shape: f32[16,128], index: 1, kind: input, shape index: {}]
  %s2 = inlined_call_operand.vmem [shape: s32[2,1], index: 2, kind: input, shape index: {}]
  %s3 = inlined_call_operand.vmem [shape: f32[2,4], index: 3, kind: input, shape index: {}]
  %s4 = inlined_call_operand.hbm [shape: f32[1,128], index: 4, kind: output, shape index: {}]
  %s5 = sld [smem:[#allocation0]]
  $region42: #{tpu_custom_call.1} parent=0
    _
  %s7 = ssub.s32 1, %s5
  %s8 = scalar_select 0, %s7, %s5
  $region1: #{tpu_custom_call.1} parent=0
    #allocation3 [shape = 'u8[8192]{0}', space=vmem, size = 0x2000, scoped, tag = 'input window, operand 0, single buffered']
    #allocation4 [shape = 's32[1]{0}', space=sflag, size = 0x4, scoped, tag = 'scoped memory for tpu_custom_call.1']
    #allocation5 [shape = 's32[1]{0}', space=sflag, size = 0x4, scoped, tag = 'scoped memory for tpu_custom_call.1']
    #allocation6 [shape = 'u8[8192]{0}', space=vmem, size = 0x2000, scoped, tag = 'input window, operand 1, single buffered']
    #allocation7 [shape = 's32[1]{0}', space=sflag, size = 0x4, scoped, tag = 'scoped memory for tpu_custom_call.1']
    #allocation8 [shape = 'u8[512]{0}', space=vmem, size = 0x400, scoped, tag = 'output window, operand 0, single buffered']
    %9 = vsyncpa [#allocation4], 0
    %10 = vsyncpa [#allocation7], 0
    %11 = vsyncpa [#allocation5], 0
    // Predicated region
    $region2: #{tpu_custom_call.1} parent=1 // pred_check
      _
    $region3: #{tpu_custom_call.1} parent=1 // pred_check_branch
      %13 = sbr.rel (0) target = $region5
    $region4: #{tpu_custom_call.1} parent=1 // pred_region
      %s14 = sadd.s32 0, 0
      %s15 = smul.u32 2, %s14
      %s17 = ssub.s32 256, 256
      %18 = vsyncadd [#allocation4], %s17
      %s19 = smul.addr %s15, 128
      %s20 = scalar_lea.hbm %s0, %s19
      %s21 = sshll.u32 [#allocation3], 4
      %s22 = int_to_ptr.vmem [resolvable:$true] %s21
      %27 = dma.hbm_to_vmem [thread:$0]  %s20, 256, %s22, [#allocation4], 128, 128, 8
    $region5: #{tpu_custom_call.1} parent=1 // pred_fallthru
      _
    // Predicated region
    $region6: #{tpu_custom_call.1} parent=1 // pred_check
      _
    $region7: #{tpu_custom_call.1} parent=1 // pred_check_branch
      %29 = sbr.rel (0) target = $region9
    $region8: #{tpu_custom_call.1} parent=1 // pred_region
      %s30 = sadd.s32 0, 0
      %s31 = smul.u32 2, %s30
      %s33 = ssub.s32 256, 256
      %34 = vsyncadd [#allocation7], %s33
      %s35 = smul.addr %s31, 128
      %s36 = scalar_lea.hbm %s1, %s35
      %s37 = sshll.u32 [#allocation6], 4
      %s38 = int_to_ptr.vmem [resolvable:$true] %s37
      %43 = dma.hbm_to_vmem [thread:$0]  %s36, 256, %s38, [#allocation7], 128, 128, 8
    $region9: #{tpu_custom_call.1} parent=1 // pred_fallthru
      _
    // Predicated region
    $region10: #{tpu_custom_call.1} parent=1 // pred_check
      _
    $region11: #{tpu_custom_call.1} parent=1 // pred_check_branch
      %45 = sbr.rel (0) target = $region13
    $region12: #{tpu_custom_call.1} parent=1 // pred_region
      _
    $region13: #{tpu_custom_call.1} parent=1 // pred_fallthru
      _
    // Predicated region
    $region14: #{tpu_custom_call.1} parent=1 // pred_check
      _
    $region15: #{tpu_custom_call.1} parent=1 // pred_check_branch
      %47 = sbr.rel (0) target = $region17
    $region16: #{tpu_custom_call.1} parent=1 // pred_region
      _
    $region17: #{tpu_custom_call.1} parent=1 // pred_fallthru
      _
    // Predicated region
    $region18: #{tpu_custom_call.1} parent=1 // pred_check
      _
    $region19: #{tpu_custom_call.1} parent=1 // pred_check_branch
      %49 = sbr.rel (0) target = $region21
    $region20: #{tpu_custom_call.1} parent=1 // pred_region
      %50 = dma.done [#allocation4], 256
    $region21: #{tpu_custom_call.1} parent=1 // pred_fallthru
      _
    // Predicated region
    $region22: #{tpu_custom_call.1} parent=1 // pred_check
      _
    $region23: #{tpu_custom_call.1} parent=1 // pred_check_branch
      %52 = sbr.rel (0) target = $region25
    $region24: #{tpu_custom_call.1} parent=1 // pred_region
      %53 = dma.done [#allocation7], 256
    $region25: #{tpu_custom_call.1} parent=1 // pred_fallthru
      _
    %s54 = sadd.s32 0, 0
    %s55 = smul.u32 2, %s54
    %s56 = sadd.s32 0, 0
    %s57 = smul.u32 2, %s56
    %p58 = scmp.eq.s32.totalorder 0, 0
    // Predicated region
    $region26: #{tpu_custom_call.1} parent=1 // pred_check
      %p59 = pneg %p58
    $region27: #{tpu_custom_call.1} parent=1 // pred_check_branch
      %61 = sbr.rel (%p59) target = $region29
    $region28: #{tpu_custom_call.1} parent=1 // pred_region
      %62 = vst [vmem:[#allocation2] sm:$0xff] 0.0
    $region29: #{tpu_custom_call.1} parent=1 // pred_fallthru
      _
    %v63 = vld [vmem:[#allocation3] sm:$0xff]
    %v64 = vld [vmem:[#allocation3 + $0x8] sm:$0xff]
    %v65 = vld [vmem:[#allocation6] sm:$0xff]
    %v66 = vld [vmem:[#allocation6 + $0x8] sm:$0xff]
    %v67 = vsub.f32 %v63, %v65
    %v68 = vsub.f32 %v64, %v66
    %v69 = vmul.f32 %v67, %v67
    %v70 = vmul.f32 %v68, %v68
    %v71 = vld [vmem:[#allocation2] sm:$0xff]
    %v72 = vadd.f32 %v69, %v70
    %v73 = vadd.f32 %v71, %v72
    %74 = vst [vmem:[#allocation2] sm:$0xff] %v73
    // Predicated region
    $region30: #{tpu_custom_call.1} parent=1 // pred_check
      %p75 = pneg %p58
    $region31: #{tpu_custom_call.1} parent=1 // pred_check_branch
      %77 = sbr.rel (%p75) target = $region33
    $region32: #{tpu_custom_call.1} parent=1 // pred_region
      %v78 = vld [vmem:[#allocation2] sm:$0xff]
      %79 = vadd.xlane.f32.xlu0 %v78
      %v80 = vpop.xlane.xlu0 %79
      %v81 = vrot.slane %v80, 4
      %v82 = vadd.f32 %v80, %v81
      %v83 = vrot.slane %v82, 2
      %v84 = vadd.f32 %v82, %v83
      %v85 = vrot.slane %v84, 1
      %v86 = vadd.f32 %v84, %v85
      %s87 = vtos %v86
      %v88 = vld [vmem:[%s3] sm:$0x3]
      %v89 = vld [vmem:[%s2] sm:$0x3]
      %vm90 = vcmask 25600
      %v91 = vsel %vm90, %v88, -inf
      %92 = vmax.xlane.f32.xlu0 %v91
      %v93 = vpop.xlane.xlu0 %92
      %v94 = vsub.f32 %v88, %v93
      %v95 = vmul.f32 %v94, 1.442695
      %v96 = vpow.pop %v95
      %v97 = vsel %vm90, %v96, 0.0
      %98 = vadd.xlane.f32.xlu0 %v97
      %v99 = vpop.xlane.xlu0 %98
      %v100 = vlog2.pop %v99
      %v101 = vmul.f32 %v100, 0.6931472
      %v102 = vadd.f32 %v101, %v93
      %v103 = vlaneseq
      %v104 = vand.u32 %v103, 127
      %105 = vset.pattern.permute.xlu0 0
      %106 = vperm.xlu0 %105, %v89
      %v107 = vpop.permute.xlu0 %106
      %vm108 = vcmp.eq.s32.totalorder %v104, %v107
      %v109 = vsel %vm108, 1, 0
      %v110 = vcvt.s32.f32 %v109
      %v111 = vmul.f32 %v88, %v110
      %v112 = vsel %vm90, %v111, 0.0
      %113 = vadd.xlane.f32.xlu0 %v112
      %v114 = vpop.xlane.xlu0 %113
      %v115 = vsub.f32 %v102, %v114
      %vm116 = vcmask 1024
      %v117 = vsel %vm116, %v115, 0.0
      %118 = vadd.xlane.f32.xlu0 %v117
      %v119 = vpop.xlane.xlu0 %118
      %v120 = vrot.slane %v119, 4
      %v121 = vadd.f32 %v119, %v120
      %v122 = vrot.slane %v121, 2
      %v123 = vadd.f32 %v121, %v122
      %v124 = vrot.slane %v123, 1
      %v125 = vadd.f32 %v123, %v124
      %s126 = vtos %v125
      %v127 = vrcp.pop 2.0
      %s128 = vtos %v127
      %s129 = smul.f32 %s126, %s128
      %vm130 = vcmp.eq.s32.totalorder %v104, 0
      %v131 = vsel %vm130, 1, 0
      %v132 = vcvt.s32.f32 %v131
      %v133 = vstv %s87
      %v134 = vmul.f32 %v133, %v132
      %vm135 = vcmp.eq.s32.totalorder %v104, 1
      %v136 = vsel %vm135, 1, 0
      %v137 = vcvt.s32.f32 %v136
      %v138 = vstv %s129
      %v139 = vmul.f32 %v138, %v137
      %v140 = vadd.f32 %v134, %v139
      %141 = vst [vmem:[#allocation8] sm:$0x1] %v140
    $region33: #{tpu_custom_call.1} parent=1 // pred_fallthru
      _
    // Predicated region
    $region34: #{tpu_custom_call.1} parent=1 // pred_check
      _
    $region35: #{tpu_custom_call.1} parent=1 // pred_check_branch
      %143 = sbr.rel (0) target = $region37
    $region36: #{tpu_custom_call.1} parent=1 // pred_region
      %s145 = ssub.s32 16, 16
      %146 = vsyncadd [#allocation5], %s145
      %s148 = sshll.u32 [#allocation8], 4
      %s149 = int_to_ptr.vmem [resolvable:$true] %s148
      %151 = dma.vmem_to_hbm [thread:$0]  %s149, 16, %s4, [#allocation5]
    $region37: #{tpu_custom_call.1} parent=1 // pred_fallthru
      _
    // Predicated region
    $region38: #{tpu_custom_call.1} parent=1 // pred_check
      _
    $region39: #{tpu_custom_call.1} parent=1 // pred_check_branch
      %153 = sbr.rel (0) target = $region41
    $region40: #{tpu_custom_call.1} parent=1 // pred_region
      %154 = dma.done [#allocation5], 16
    $region41: #{tpu_custom_call.1} parent=1 // pred_fallthru
      _
    %155 = vsyncpa [#allocation4], 1
    %156 = vsyncpa [#allocation7], 1
    %157 = vsyncpa [#allocation5], 1

</llo_original>
